<compile_context>
chip_gen: v7x
topology: tpu7x:2x2x1
jax: 0.10.0
libtpu: 0.0.40
codegen_flags: <defaults>
</compile_context>

<pallas_src>
import jax
import jax.numpy as jnp
from jax import lax
from jax.experimental import pallas as pl
from jax.experimental.pallas import tpu as pltpu


def _round_up(x, m):
    return ((x + m - 1) // m) * m


def _fused_mbconv_kernel(p_ref, w1_ref, b1_ref, w2_ref, b2_ref, o_ref):
    # p_ref : (1, KKCp, THW)   im2col'd input (compute dtype), spatial on lanes
    # w1_ref: (Cmidp, KKCp)    spatial conv weight, BN scale folded, transposed
    # b1_ref: (Cmidp, 1)       BN shift for the spatial conv (f32)
    # w2_ref: (Coutp, Cmidp)   pointwise conv weight, BN scale folded, transposed
    # b2_ref: (Coutp, 1)       BN shift for the pointwise conv (f32)
    # o_ref : (1, Coutp, THW)  lane-dense output block
    patches = p_ref[0]                                            # (KKCp, THW)

    # ---- KxK "spatial" conv as one deep matmul (MXU) + BN shift + ReLU6 ----
    mid = jnp.dot(w1_ref[...], patches, preferred_element_type=jnp.float32)
    mid = jnp.clip(mid + b1_ref[...], 0.0, 6.0)
    # Halve vreg/VMEM pressure of the intermediate and feed GEMM2 at MXU dtype.
    mid = mid.astype(w2_ref.dtype)                                # (Cmidp, THW)

    # ---- 1x1 pointwise conv + BN shift (no activation) ----
    out = jnp.dot(w2_ref[...], mid, preferred_element_type=jnp.float32)
    o_ref[0] = (out + b2_ref[...]).astype(o_ref.dtype)            # (Coutp, THW)


def fused_mbconv(x_nchw, w1, s1, b1, w2, s2, b2, *, K=3,
                 compute_dtype=jnp.bfloat16,
                 vmem_budget_bytes=40 * 2**20):
    """FusedMBConv forward (stride=1, "SAME" padding), BN in inference mode.

    x_nchw: (N, Cin, H, W).  w1: (K, K, Cin, Cmid) HWIO.  w2: (Cmid, Cout).
    s1/b1, s2/b2: per-channel BatchNorm scale/shift (gamma,beta,mean,var folded).
    Returns (N, Cout, H, W) in x_nchw.dtype.
    """
    assert K % 2 == 1, "stride=1 'SAME' fusion requires an odd kernel size"
    N, Cin, H, W = x_nchw.shape
    Cmid = w1.shape[-1]
    Cout = w2.shape[-1]
    pad = (K - 1) // 2
    HW = H * W
    KKC = K * K * Cin

    itemsize = jnp.dtype(compute_dtype).itemsize
    out_itemsize = jnp.dtype(x_nchw.dtype).itemsize
    csub = 8 * (4 // itemsize)              # sublane pack: 8 (f32) / 16 (bf16)
    KKC_p = _round_up(KKC, csub)
    Cmid_p = _round_up(Cmid, csub)
    Cout_p = _round_up(Cout, 8)             # output stays in x dtype
    HW_p = _round_up(HW, 128)               # lane-dense loads/stores

    # ---- pick a spatial tile that fits the VMEM budget (generation-aware) ----
    def vmem_bytes(thw):
        in_buf = 2 * KKC_p * thw * itemsize                 # double-buffered patches
        out_buf = 2 * Cout_p * thw * out_itemsize           # double-buffered output
        mid_buf = Cmid_p * thw * (4 + itemsize)             # f32 mid + compute-dtype copy
        w_buf = (2 * (Cmid_p * KKC_p + Cout_p * Cmid_p) * itemsize
                 + 2 * (Cmid_p + Cout_p) * 4)               # weights (worst case 2x)
        return in_buf + out_buf + mid_buf + w_buf

    max_thw = HW_p
    if N == 1 and HW_p % 256 == 0:
        max_thw = HW_p // 2          # >= 2 grid points so both v7x TCs get work
    thw_block = 128
    t = 128
    while t <= max_thw:
        if HW_p % t == 0 and vmem_bytes(t) <= vmem_budget_bytes:
            thw_block = t
        t += 128
    vmem_limit = int(min(60 * 2**20, max(32 * 2**20, 2 * vmem_bytes(thw_block))))

    # ---- offline weight prep: fold BN scales into conv weights, pad, cast ----
    w1t = (w1 * s1).reshape(KKC, Cmid).T                    # (Cmid, KKC), taps (kh, kw, cin)
    w1t = jnp.pad(w1t, ((0, Cmid_p - Cmid), (0, KKC_p - KKC))).astype(compute_dtype)
    w2t = jnp.pad((w2 * s2).T, ((0, Cout_p - Cout), (0, Cmid_p - Cmid))).astype(compute_dtype)
    b1c = jnp.pad(b1.astype(jnp.float32).reshape(Cmid, 1), ((0, Cmid_p - Cmid), (0, 0)))
    b2c = jnp.pad(b2.astype(jnp.float32).reshape(Cout, 1), ((0, Cout_p - Cout), (0, 0)))

    # ---- im2col straight into (N, KKC, HW): no NHWC / final transpose ----
    xp = jnp.pad(x_nchw, ((0, 0), (0, 0), (pad, pad), (pad, pad)))
    taps = [xp[:, :, kh:kh + H, kw:kw + W]                  # stride=1 "SAME", taps (kh, kw, cin)
            for kh in range(K) for kw in range(K)]
    patches = jnp.concatenate(taps, axis=1).reshape(N, KKC, HW)
    patches = jnp.pad(patches, ((0, 0), (0, KKC_p - KKC), (0, HW_p - HW)))
    patches = patches.astype(compute_dtype)                 # ~2x less HBM traffic (bf16)

    grid = (N, HW_p // thw_block)

    def run(single_buffer_weights):
        const_kw = ({"pipeline_mode": pl.Buffered(1)}       # no duplicate weight buffers
                    if single_buffer_weights else {})
        return pl.pallas_call(
            _fused_mbconv_kernel,
            out_shape=jax.ShapeDtypeStruct((N, Cout_p, HW_p), x_nchw.dtype),
            grid_spec=pltpu.PrefetchScalarGridSpec(
                num_scalar_prefetch=0,
                grid=grid,
                in_specs=[
                    pl.BlockSpec((1, KKC_p, thw_block), lambda n, s: (n, 0, s)),
                    pl.BlockSpec((Cmid_p, KKC_p), lambda n, s: (0, 0), **const_kw),
                    pl.BlockSpec((Cmid_p, 1), lambda n, s: (0, 0), **const_kw),
                    pl.BlockSpec((Cout_p, Cmid_p), lambda n, s: (0, 0), **const_kw),
                    pl.BlockSpec((Cout_p, 1), lambda n, s: (0, 0), **const_kw),
                ],
                out_specs=pl.BlockSpec((1, Cout_p, thw_block), lambda n, s: (n, 0, s)),
            ),
            compiler_params=pltpu.CompilerParams(
                dimension_semantics=("parallel", "parallel"),
                vmem_limit_bytes=vmem_limit),
        )(patches, w1t, b1c, w2t, b2c)

    try:
        out = run(True)
    except Exception:
        # Fallback for jax versions where pipeline_mode=pl.Buffered(1) is not
        # accepted on TPU; only costs the duplicated (tiny-at-test-size) weights.
        out = run(False)

    # Drop channel / lane padding; (N, Cout, H*W) reshapes straight to NCHW.
    return out[:, :Cout, :HW].reshape(N, Cout, H, W)


def _reference(x_nchw, w1, s1, b1, w2, s2, b2):
    """Pure-JAX reference (same math as the PyTorch module in eval mode)."""
    x = jnp.transpose(x_nchw, (0, 2, 3, 1))
    h = lax.conv_general_dilated(x, w1, (1, 1), "SAME",
                                 dimension_numbers=("NHWC", "HWIO", "NHWC"))
    h = jnp.clip(h * s1 + b1, 0.0, 6.0)
    o = jnp.einsum("nhwc,cd->nhwd", h, w2) * s2 + b2
    return jnp.transpose(o, (0, 3, 1, 2))


if __name__ == "__main__":
    # FusedMBConv config: in_channels=4, out_channels=4, kernel_size=3,
    # stride=1, expand_ratio=6 -> mid_channels=24, bias=False, BN+ReLU6 / BN.
    N, Cin, H, W = 2, 4, 16, 16
    K = 3
    Cmid = round(Cin * 6)
    Cout = 4
    eps = 1e-5

    key = jax.random.PRNGKey(0)
    k = jax.random.split(key, 10)

    x = jax.random.normal(k[0], (N, Cin, H, W), dtype=jnp.float32)

    # Conv weights (HWIO layout), no conv bias (use_bias=False).
    w1 = 0.1 * jax.random.normal(k[1], (K, K, Cin, Cmid), dtype=jnp.float32)
    w2 = 0.1 * jax.random.normal(k[2], (Cmid, Cout), dtype=jnp.float32)

    # BatchNorm params (inference mode, folded to scale/shift).
    g1 = 1.0 + 0.1 * jax.random.normal(k[3], (Cmid,), dtype=jnp.float32)
    be1 = 0.1 * jax.random.normal(k[4], (Cmid,), dtype=jnp.float32)
    m1 = 0.1 * jax.random.normal(k[5], (Cmid,), dtype=jnp.float32)
    v1 = jnp.abs(1.0 + 0.1 * jax.random.normal(k[6], (Cmid,), dtype=jnp.float32))
    s1 = g1 / jnp.sqrt(v1 + eps)
    b1 = be1 - m1 * s1

    g2 = 1.0 + 0.1 * jax.random.normal(k[7], (Cout,), dtype=jnp.float32)
    be2 = 0.1 * jax.random.normal(k[8], (Cout,), dtype=jnp.float32)
    m2 = 0.1 * jax.random.normal(k[9], (Cout,), dtype=jnp.float32)
    v2 = jnp.ones((Cout,), dtype=jnp.float32)
    s2 = g2 / jnp.sqrt(v2 + eps)
    b2 = be2 - m2 * s2

    ref = _reference(x, w1, s1, b1, w2, s2, b2)

    # Strict check of the kernel structure with f32 compute.
    out_f32 = jax.block_until_ready(
        fused_mbconv(x, w1, s1, b1, w2, s2, b2, K=K, compute_dtype=jnp.float32))
    assert out_f32.shape == (N, Cout, H, W)
    assert jnp.allclose(out_f32, ref, atol=1e-4, rtol=1e-4), "f32 mismatch vs reference"

    # Default bf16 compute path (the mem-bound-optimized configuration).
    out_bf16 = jax.block_until_ready(fused_mbconv(x, w1, s1, b1, w2, s2, b2, K=K))
    assert out_bf16.shape == (N, Cout, H, W)
    err = float(jnp.max(jnp.abs(out_bf16 - ref)))
    assert err < 7.5e-2, f"bf16 mismatch vs reference (max abs err {err})"

    print("KERNEL_OK")
</pallas_src>

<mosaic_0001>
module attributes {stable_mosaic.version = 11 : i64} {
  func.func @_fused_mbconv_kernel(%arg0: i32, %arg1: i32, %arg2: memref<1x40x256xf32, #tpu.memory_space<vmem>>, %arg3: memref<24x40xf32, #tpu.memory_space<vmem>>, %arg4: memref<24x1xf32, #tpu.memory_space<vmem>>, %arg5: memref<8x24xf32, #tpu.memory_space<vmem>>, %arg6: memref<8x1xf32, #tpu.memory_space<vmem>>, %arg7: memref<1x8x256xf32, #tpu.memory_space<vmem>>) attributes {dimension_semantics = [#tpu.dimension_semantics<parallel>, #tpu.dimension_semantics<parallel>], iteration_bounds = array<i64: 2, 1>, scalar_prefetch = 0 : i64, scratch_operands = 0 : i64, tpu.core_type = #tpu.core_type<tc>, window_params = [{transform_indices = @transform_0, window_bounds = array<i64: 1, 40, 256>}, {pipeline_mode = #tpu.pipeline_mode<synchronous>, transform_indices = @transform_1, window_bounds = array<i64: 24, 40>}, {pipeline_mode = #tpu.pipeline_mode<synchronous>, transform_indices = @transform_2, window_bounds = array<i64: 24, 1>}, {pipeline_mode = #tpu.pipeline_mode<synchronous>, transform_indices = @transform_3, window_bounds = array<i64: 8, 24>}, {pipeline_mode = #tpu.pipeline_mode<synchronous>, transform_indices = @transform_4, window_bounds = array<i64: 8, 1>}, {transform_indices = @transform_5, window_bounds = array<i64: 1, 8, 256>}]} {
    %c0 = arith.constant 0 : index
    %c0_0 = arith.constant 0 : index
    %c0_1 = arith.constant 0 : index
    %0 = vector.load %arg2[%c0, %c0_0, %c0_1] : memref<1x40x256xf32, #tpu.memory_space<vmem>>, vector<1x40x256xf32>
    %1 = vector.shape_cast %0 : vector<1x40x256xf32> to vector<40x256xf32>
    %c0_2 = arith.constant 0 : index
    %c0_3 = arith.constant 0 : index
    %2 = vector.load %arg3[%c0_2, %c0_3] : memref<24x40xf32, #tpu.memory_space<vmem>>, vector<24x40xf32>
    %cst = arith.constant dense<0.000000e+00> : vector<24x256xf32>
    %3 = tpu.matmul %2, %1, %cst {dimension_numbers = #tpu.dot_dimension_numbers<[1], [0], [0], [1], [0, 0, 1, 1], [], []>} : vector<24x40xf32>, vector<40x256xf32>, vector<24x256xf32> -> vector<24x256xf32>
    %c0_4 = arith.constant 0 : index
    %c0_5 = arith.constant 0 : index
    %4 = vector.load %arg4[%c0_4, %c0_5] : memref<24x1xf32, #tpu.memory_space<vmem>>, vector<24x1xf32>
    %5 = vector.broadcast %4 : vector<24x1xf32> to vector<24x256xf32>
    %6 = arith.addf %3, %5 : vector<24x256xf32>
    %cst_6 = arith.constant 0.000000e+00 : f32
    %cst_7 = arith.constant 6.000000e+00 : f32
    %7 = vector.broadcast %cst_6 : f32 to vector<24x256xf32>
    %8 = arith.maximumf %7, %6 : vector<24x256xf32>
    %9 = vector.broadcast %cst_7 : f32 to vector<24x256xf32>
    %10 = arith.minimumf %9, %8 : vector<24x256xf32>
    %c0_8 = arith.constant 0 : index
    %c0_9 = arith.constant 0 : index
    %11 = vector.load %arg5[%c0_8, %c0_9] : memref<8x24xf32, #tpu.memory_space<vmem>>, vector<8x24xf32>
    %cst_10 = arith.constant dense<0.000000e+00> : vector<8x256xf32>
    %12 = tpu.matmul %11, %10, %cst_10 {dimension_numbers = #tpu.dot_dimension_numbers<[1], [0], [0], [1], [0, 0, 1, 1], [], []>} : vector<8x24xf32>, vector<24x256xf32>, vector<8x256xf32> -> vector<8x256xf32>
    %c0_11 = arith.constant 0 : index
    %c0_12 = arith.constant 0 : index
    %13 = vector.load %arg6[%c0_11, %c0_12] : memref<8x1xf32, #tpu.memory_space<vmem>>, vector<8x1xf32>
    %14 = vector.broadcast %13 : vector<8x1xf32> to vector<8x256xf32>
    %15 = arith.addf %12, %14 : vector<8x256xf32>
    %c0_13 = arith.constant 0 : index
    %c0_14 = arith.constant 0 : index
    %c0_15 = arith.constant 0 : index
    %16 = vector.load %arg7[%c0_13, %c0_14, %c0_15] : memref<1x8x256xf32, #tpu.memory_space<vmem>>, vector<1x8x256xf32>
    %17 = vector.shape_cast %16 : vector<1x8x256xf32> to vector<8x256xf32>
    %18 = vector.shape_cast %15 : vector<8x256xf32> to vector<1x8x256xf32>
    tpu.vector_store %arg7[%c0_13, %c0_14, %c0_15], %18 {strides = array<i32>} : memref<1x8x256xf32, #tpu.memory_space<vmem>>, vector<1x8x256xf32>,
    return
  }
  func.func @transform_0(%arg0: i32, %arg1: i32) -> (i32, i32, i32) {
    %c0_i32 = arith.constant 0 : i32
    %c0_i32_0 = arith.constant 0 : i32
    return %arg0, %c0_i32, %arg1 : i32, i32, i32
  }
  func.func @transform_1(%arg0: i32, %arg1: i32) -> (i32, i32) {
    %c0_i32 = arith.constant 0 : i32
    %c0_i32_0 = arith.constant 0 : i32
    %c0_i32_1 = arith.constant 0 : i32
    return %c0_i32, %c0_i32_0 : i32, i32
  }
  func.func @transform_2(%arg0: i32, %arg1: i32) -> (i32, i32) {
    %c0_i32 = arith.constant 0 : i32
    %c0_i32_0 = arith.constant 0 : i32
    %c0_i32_1 = arith.constant 0 : i32
    return %c0_i32, %c0_i32_0 : i32, i32
  }
  func.func @transform_3(%arg0: i32, %arg1: i32) -> (i32, i32) {
    %c0_i32 = arith.constant 0 : i32
    %c0_i32_0 = arith.constant 0 : i32
    %c0_i32_1 = arith.constant 0 : i32
    return %c0_i32, %c0_i32_0 : i32, i32
  }
  func.func @transform_4(%arg0: i32, %arg1: i32) -> (i32, i32) {
    %c0_i32 = arith.constant 0 : i32
    %c0_i32_0 = arith.constant 0 : i32
    %c0_i32_1 = arith.constant 0 : i32
    return %c0_i32, %c0_i32_0 : i32, i32
  }
  func.func @transform_5(%arg0: i32, %arg1: i32) -> (i32, i32, i32) {
    %c0_i32 = arith.constant 0 : i32
    %c0_i32_0 = arith.constant 0 : i32
    return %arg0, %c0_i32, %arg1 : i32, i32, i32
  }
}

module attributes {stable_mosaic.version = 11 : i64} {
  func.func @_fused_mbconv_kernel(%arg0: i32, %arg1: i32, %arg2: memref<1x40x256xf32, #tpu.memory_space<vmem>>, %arg3: memref<24x40xf32, #tpu.memory_space<vmem>>, %arg4: memref<24x1xf32, #tpu.memory_space<vmem>>, %arg5: memref<8x24xf32, #tpu.memory_space<vmem>>, %arg6: memref<8x1xf32, #tpu.memory_space<vmem>>, %arg7: memref<1x8x256xf32, #tpu.memory_space<vmem>>) attributes {dimension_semantics = [#tpu.dimension_semantics<parallel>, #tpu.dimension_semantics<parallel>], iteration_bounds = array<i64: 2, 1>, scalar_prefetch = 0 : i64, scratch_operands = 0 : i64, tpu.core_type = #tpu.core_type<tc>, window_params = [{transform_indices = @transform_0, window_bounds = array<i64: 1, 40, 256>}, {pipeline_mode = #tpu.pipeline_mode<synchronous>, transform_indices = @transform_1, window_bounds = array<i64: 24, 40>}, {pipeline_mode = #tpu.pipeline_mode<synchronous>, transform_indices = @transform_2, window_bounds = array<i64: 24, 1>}, {pipeline_mode = #tpu.pipeline_mode<synchronous>, transform_indices = @transform_3, window_bounds = array<i64: 8, 24>}, {pipeline_mode = #tpu.pipeline_mode<synchronous>, transform_indices = @transform_4, window_bounds = array<i64: 8, 1>}, {transform_indices = @transform_5, window_bounds = array<i64: 1, 8, 256>}]} {
    %c0 = arith.constant 0 : index
    %c0_0 = arith.constant 0 : index
    %c0_1 = arith.constant 0 : index
    %0 = vector.load %arg2[%c0, %c0_0, %c0_1] : memref<1x40x256xf32, #tpu.memory_space<vmem>>, vector<1x40x256xf32>
    %1 = vector.shape_cast %0 : vector<1x40x256xf32> to vector<40x256xf32>
    %c0_2 = arith.constant 0 : index
    %c0_3 = arith.constant 0 : index
    %2 = vector.load %arg3[%c0_2, %c0_3] : memref<24x40xf32, #tpu.memory_space<vmem>>, vector<24x40xf32>
    %cst = arith.constant dense<0.000000e+00> : vector<24x256xf32>
    %3 = tpu.matmul %2, %1, %cst {dimension_numbers = #tpu.dot_dimension_numbers<[1], [0], [0], [1], [0, 0, 1, 1], [], []>} : vector<24x40xf32>, vector<40x256xf32>, vector<24x256xf32> -> vector<24x256xf32>
    %c0_4 = arith.constant 0 : index
    %c0_5 = arith.constant 0 : index
    %4 = vector.load %arg4[%c0_4, %c0_5] : memref<24x1xf32, #tpu.memory_space<vmem>>, vector<24x1xf32>
    %5 = vector.broadcast %4 : vector<24x1xf32> to vector<24x256xf32>
    %6 = arith.addf %3, %5 : vector<24x256xf32>
    %cst_6 = arith.constant 0.000000e+00 : f32
    %cst_7 = arith.constant 6.000000e+00 : f32
    %7 = vector.broadcast %cst_6 : f32 to vector<24x256xf32>
    %8 = arith.maximumf %7, %6 : vector<24x256xf32>
    %9 = vector.broadcast %cst_7 : f32 to vector<24x256xf32>
    %10 = arith.minimumf %9, %8 : vector<24x256xf32>
    %c0_8 = arith.constant 0 : index
    %c0_9 = arith.constant 0 : index
    %11 = vector.load %arg5[%c0_8, %c0_9] : memref<8x24xf32, #tpu.memory_space<vmem>>, vector<8x24xf32>
    %cst_10 = arith.constant dense<0.000000e+00> : vector<8x256xf32>
    %12 = tpu.matmul %11, %10, %cst_10 {dimension_numbers = #tpu.dot_dimension_numbers<[1], [0], [0], [1], [0, 0, 1, 1], [], []>} : vector<8x24xf32>, vector<24x256xf32>, vector<8x256xf32> -> vector<8x256xf32>
    %c0_11 = arith.constant 0 : index
    %c0_12 = arith.constant 0 : index
    %13 = vector.load %arg6[%c0_11, %c0_12] : memref<8x1xf32, #tpu.memory_space<vmem>>, vector<8x1xf32>
    %14 = vector.broadcast %13 : vector<8x1xf32> to vector<8x256xf32>
    %15 = arith.addf %12, %14 : vector<8x256xf32>
    %c0_13 = arith.constant 0 : index
    %c0_14 = arith.constant 0 : index
    %c0_15 = arith.constant 0 : index
    %16 = vector.load %arg7[%c0_13, %c0_14, %c0_15] : memref<1x8x256xf32, #tpu.memory_space<vmem>>, vector<1x8x256xf32>
    %17 = vector.shape_cast %16 : vector<1x8x256xf32> to vector<8x256xf32>
    %18 = vector.shape_cast %15 : vector<8x256xf32> to vector<1x8x256xf32>
    tpu.vector_store %arg7[%c0_13, %c0_14, %c0_15], %18 {strides = array<i32>} : memref<1x8x256xf32, #tpu.memory_space<vmem>>, vector<1x8x256xf32>,
    return
  }
  func.func @transform_0(%arg0: i32, %arg1: i32) -> (i32, i32, i32) {
    %c0_i32 = arith.constant 0 : i32
    %c0_i32_0 = arith.constant 0 : i32
    return %arg0, %c0_i32, %arg1 : i32, i32, i32
  }
  func.func @transform_1(%arg0: i32, %arg1: i32) -> (i32, i32) {
    %c0_i32 = arith.constant 0 : i32
    %c0_i32_0 = arith.constant 0 : i32
    %c0_i32_1 = arith.constant 0 : i32
    return %c0_i32, %c0_i32_0 : i32, i32
  }
  func.func @transform_2(%arg0: i32, %arg1: i32) -> (i32, i32) {
    %c0_i32 = arith.constant 0 : i32
    %c0_i32_0 = arith.constant 0 : i32
    %c0_i32_1 = arith.constant 0 : i32
    return %c0_i32, %c0_i32_0 : i32, i32
  }
  func.func @transform_3(%arg0: i32, %arg1: i32) -> (i32, i32) {
    %c0_i32 = arith.constant 0 : i32
    %c0_i32_0 = arith.constant 0 : i32
    %c0_i32_1 = arith.constant 0 : i32
    return %c0_i32, %c0_i32_0 : i32, i32
  }
  func.func @transform_4(%arg0: i32, %arg1: i32) -> (i32, i32) {
    %c0_i32 = arith.constant 0 : i32
    %c0_i32_0 = arith.constant 0 : i32
    %c0_i32_1 = arith.constant 0 : i32
    return %c0_i32, %c0_i32_0 : i32, i32
  }
  func.func @transform_5(%arg0: i32, %arg1: i32) -> (i32, i32, i32) {
    %c0_i32 = arith.constant 0 : i32
    %c0_i32_0 = arith.constant 0 : i32
    return %arg0, %c0_i32, %arg1 : i32, i32, i32
  }
}

</mosaic_0001>

<llo_original>
// kernel: tpu_custom_call.1
$region0: #{tpu_custom_call.1}
  #allocation0 [shape = 'u32[]', space=smem, size = 0x4, offset = 0x4, fixed_abs, tag = 'smem constant byte address 0x4 - core index']
  #allocation1 [shape = 'u32[144,128]{1,0:T(1,128)}', space=vmem, size = 0x12000, scoped, tag = 'internal scratch']
  %s0 = inlined_call_operand.hbm [shape: f32[2,40,256], index: 0, kind: input, shape index: {}]
  %s1 = inlined_call_operand.vmem [shape: f32[24,40], index: 1, kind: input, shape index: {}]
  %s2 = inlined_call_operand.vmem [shape: f32[24,1], index: 2, kind: input, shape index: {}]
  %s3 = inlined_call_operand.vmem [shape: f32[8,24], index: 3, kind: input, shape index: {}]
  %s4 = inlined_call_operand.vmem [shape: f32[8,1], index: 4, kind: input, shape index: {}]
  %s5 = inlined_call_operand.hbm [shape: f32[2,8,256], index: 5, kind: output, shape index: {}]
  %s6 = sld [smem:[#allocation0]]
  $region57: #{tpu_custom_call.1} parent=0
    _
  %s8 = ssub.s32 1, %s6
  %s9 = scalar_select 0, %s8, %s6
  $region1: #{tpu_custom_call.1} parent=0
    #allocation2 [shape = 'u8[81920]{0}', space=vmem, size = 0x14000, scoped, tag = 'input window, operand 0']
    #allocation3 [shape = 's32[2]{0}', space=sflag, size = 0x8, scoped, tag = 'scoped memory for tpu_custom_call.1']
    #allocation4 [shape = 's32[2]{0}', space=sflag, size = 0x8, scoped, tag = 'scoped memory for tpu_custom_call.1']
    #allocation5 [shape = 'u8[16384]{0}', space=vmem, size = 0x4000, scoped, tag = 'output window, operand 0']
    %10 = vsyncpa [#allocation3], 0
    %s11 = scalar_lea.sflag [#allocation3], 1
    %12 = vsyncpa %s11, 0
    %13 = vsyncpa [#allocation4], 0
    %s14 = scalar_lea.sflag [#allocation4], 1
    %15 = vsyncpa %s14, 0
    loop: start=0, step=1, limit=4
    $region2: #{tpu_custom_call.1} parent=1 // loop_pre_header
      _
    $region3: #{tpu_custom_call.1} parent=1 // loop_header
      %s17 = sphi 0, %s21
      %p18 = scmp.ge.s32.totalorder %s17, 4
      %s24 = sphi 0, %s36
      %s25 = sphi 0, %s32
      %s26 = sphi 0, %s24
      %s27 = sphi 0, %s25
      %s28 = sphi 0, %s26
      %s29 = sphi 0, %s27
      %s41 = sphi 0, %s43
      %s44 = sphi 0, %s41
      %s45 = sphi 0, %s44
      %s61 = sphi 0, %s45
      %s65 = sphi 0, %s65
      %s67 = sphi 0, %s65
      %s68 = sphi 0, %s67
      %s82 = sphi 0, %s68
      %s86 = sphi 0, %s86
      %s88 = sphi 0, %s86
      %s89 = sphi 0, %s88
      %s103 = sphi 0, %s89
      %s107 = sphi 0, %s107
      %s109 = sphi 0, %s107
      %s110 = sphi 0, %s109
      %s124 = sphi 0, %s110
      %s128 = sphi 0, %s128
      %s130 = sphi 0, %s128
      %s131 = sphi 0, %s130
      %s145 = sphi 0, %s131
      %s153 = sphi 0, %s155
      %s156 = sphi 0, %s153
      %s157 = sphi 0, %s156
      %s173 = sphi 0, %s157
    $region4: #{tpu_custom_call.1} parent=1 // loop_header_branch
      %20 = sbr.rel (%p18) target = $region8
    $region5: #{tpu_custom_call.1} parent=1 // loop_body
      %s22 = ssub.s32 %s17, 1
      %s23 = ssub.s32 %s17, 2
      %s30 = sadd.s32 1, %s25
      %p31 = scmp.ge.s32.totalorder %s30, 1
      %s32 = scalar_select %p31, 0, %s30
      %s33 = sadd.s32 1, %s24
      %s34 = scalar_select %p31, %s33, %s24
      %p35 = scmp.ge.s32.totalorder %s34, 2
      %s36 = scalar_select %p35, 0, %s34
      %s37 = ssub.s32 %s24, %s36
      %s38 = ssub.s32 %s25, %s32
      %s39 = sor.u32 %s37, %s38
      %p40 = scmp.eq.s32.totalorder %s39, 0
      %s42 = sadd.s32 %s41, 1
      %s43 = scalar_select %p40, %s41, %s42
      %p46 = pneg %p40
      %p47 = scmp.eq.s32.totalorder %s17, 1
      %p48 = por %p46, %p47
      %p49 = scmp.ne.s32.totalorder %s41, %s44
      %p50 = scmp.eq.s32.totalorder %s17, 0
      %p51 = por %p49, %p50
      %p52 = scmp.ne.s32.totalorder %s41, %s44
      %p53 = scmp.eq.s32.totalorder %s22, 1
      %p54 = por %p52, %p53
      %p55 = scmp.ne.s32.totalorder %s44, %s45
      %p56 = scmp.eq.s32.totalorder %s22, 0
      %p57 = por %p55, %p56
      %p58 = scmp.ne.s32.totalorder %s44, %s45
      %p59 = scmp.eq.s32.totalorder %s23, 1
      %p60 = por %p58, %p59
      %p62 = scmp.ne.s32.totalorder %s45, %s61
      %p63 = scmp.eq.s32.totalorder %s23, 0
      %p64 = por %p62, %p63
      %s66 = sadd.s32 %s65, 1
      %p69 = scmp.eq.s32.totalorder %s17, 1
      %p70 = scmp.ne.s32.totalorder %s65, %s67
      %p71 = scmp.eq.s32.totalorder %s17, 0
      %p72 = por %p70, %p71
      %p73 = scmp.ne.s32.totalorder %s65, %s67
      %p74 = scmp.eq.s32.totalorder %s22, 1
      %p75 = por %p73, %p74
      %p76 = scmp.ne.s32.totalorder %s67, %s68
      %p77 = scmp.eq.s32.totalorder %s22, 0
      %p78 = por %p76, %p77
      %p79 = scmp.ne.s32.totalorder %s67, %s68
      %p80 = scmp.eq.s32.totalorder %s23, 1
      %p81 = por %p79, %p80
      %p83 = scmp.ne.s32.totalorder %s68, %s82
      %p84 = scmp.eq.s32.totalorder %s23, 0
      %p85 = por %p83, %p84
      %s87 = sadd.s32 %s86, 1
      %p90 = scmp.eq.s32.totalorder %s17, 1
      %p91 = scmp.ne.s32.totalorder %s86, %s88
      %p92 = scmp.eq.s32.totalorder %s17, 0
      %p93 = por %p91, %p92
      %p94 = scmp.ne.s32.totalorder %s86, %s88
      %p95 = scmp.eq.s32.totalorder %s22, 1
      %p96 = por %p94, %p95
      %p97 = scmp.ne.s32.totalorder %s88, %s89
      %p98 = scmp.eq.s32.totalorder %s22, 0
      %p99 = por %p97, %p98
      %p100 = scmp.ne.s32.totalorder %s88, %s89
      %p101 = scmp.eq.s32.totalorder %s23, 1
      %p102 = por %p100, %p101
      %p104 = scmp.ne.s32.totalorder %s89, %s103
      %p105 = scmp.eq.s32.totalorder %s23, 0
      %p106 = por %p104, %p105
      %s108 = sadd.s32 %s107, 1
      %p111 = scmp.eq.s32.totalorder %s17, 1
      %p112 = scmp.ne.s32.totalorder %s107, %s109
      %p113 = scmp.eq.s32.totalorder %s17, 0
      %p114 = por %p112, %p113
      %p115 = scmp.ne.s32.totalorder %s107, %s109
      %p116 = scmp.eq.s32.totalorder %s22, 1
      %p117 = por %p115, %p116
      %p118 = scmp.ne.s32.totalorder %s109, %s110
      %p119 = scmp.eq.s32.totalorder %s22, 0
      %p120 = por %p118, %p119
      %p121 = scmp.ne.s32.totalorder %s109, %s110
      %p122 = scmp.eq.s32.totalorder %s23, 1
      %p123 = por %p121, %p122
      %p125 = scmp.ne.s32.totalorder %s110, %s124
      %p126 = scmp.eq.s32.totalorder %s23, 0
      %p127 = por %p125, %p126
      %s129 = sadd.s32 %s128, 1
      %p132 = scmp.eq.s32.totalorder %s17, 1
      %p133 = scmp.ne.s32.totalorder %s128, %s130
      %p134 = scmp.eq.s32.totalorder %s17, 0
      %p135 = por %p133, %p134
      %p136 = scmp.ne.s32.totalorder %s128, %s130
      %p137 = scmp.eq.s32.totalorder %s22, 1
      %p138 = por %p136, %p137
      %p139 = scmp.ne.s32.totalorder %s130, %s131
      %p140 = scmp.eq.s32.totalorder %s22, 0
      %p141 = por %p139, %p140
      %p142 = scmp.ne.s32.totalorder %s130, %s131
      %p143 = scmp.eq.s32.totalorder %s23, 1
      %p144 = por %p142, %p143
      %p146 = scmp.ne.s32.totalorder %s131, %s145
      %p147 = scmp.eq.s32.totalorder %s23, 0
      %p148 = por %p146, %p147
      %s149 = ssub.s32 %s24, %s36
      %s150 = ssub.s32 %s25, %s32
      %s151 = sor.u32 %s149, %s150
      %p152 = scmp.eq.s32.totalorder %s151, 0
      %s154 = sadd.s32 %s153, 1
      %s155 = scalar_select %p152, %s153, %s154
      %p158 = pneg %p152
      %p159 = scmp.eq.s32.totalorder %s17, 1
      %p160 = por %p158, %p159
      %p161 = scmp.ne.s32.totalorder %s153, %s156
      %p162 = scmp.eq.s32.totalorder %s17, 0
      %p163 = por %p161, %p162
      %p164 = scmp.ne.s32.totalorder %s153, %s156
      %p165 = scmp.eq.s32.totalorder %s22, 1
      %p166 = por %p164, %p165
      %p167 = scmp.ne.s32.totalorder %s156, %s157
      %p168 = scmp.eq.s32.totalorder %s22, 0
      %p169 = por %p167, %p168
      %p170 = scmp.ne.s32.totalorder %s156, %s157
      %p171 = scmp.eq.s32.totalorder %s23, 1
      %p172 = por %p170, %p171
      %p174 = scmp.ne.s32.totalorder %s157, %s173
      %p175 = scmp.eq.s32.totalorder %s23, 0
      %p176 = por %p174, %p175
      %p177 = scmp.le.s32.totalorder 1, %s17
      %p178 = scmp.lt.s32.totalorder %s17, 3
      %p179 = pnand %p177, %p178
      %p180 = pneg %p179
      // Predicated region
      $region9: #{tpu_custom_call.1} parent=5 // pred_check
        _
      $region10: #{tpu_custom_call.1} parent=5 // pred_check_branch
        %182 = sbr.rel (%p179) target = $region12
      $region11: #{tpu_custom_call.1} parent=5 // pred_region
        %s183 = ssub.s32 %s17, 1
        // Predicated region
        $region13: #{tpu_custom_call.1} parent=11 // pred_check
          %p184 = pneg %p78
        $region14: #{tpu_custom_call.1} parent=11 // pred_check_branch
          %186 = sbr.rel (%p184) target = $region16
        $region15: #{tpu_custom_call.1} parent=11 // pred_region
          _
        $region16: #{tpu_custom_call.1} parent=11 // pred_fallthru
          _
        // Predicated region
        $region17: #{tpu_custom_call.1} parent=11 // pred_check
          %p187 = pneg %p99
        $region18: #{tpu_custom_call.1} parent=11 // pred_check_branch
          %189 = sbr.rel (%p187) target = $region20
        $region19: #{tpu_custom_call.1} parent=11 // pred_region
          _
        $region20: #{tpu_custom_call.1} parent=11 // pred_fallthru
          _
        // Predicated region
        $region21: #{tpu_custom_call.1} parent=11 // pred_check
          %p190 = pneg %p120
        $region22: #{tpu_custom_call.1} parent=11 // pred_check_branch
          %192 = sbr.rel (%p190) target = $region24
        $region23: #{tpu_custom_call.1} parent=11 // pred_region
          _
        $region24: #{tpu_custom_call.1} parent=11 // pred_fallthru
          _
        // Predicated region
        $region25: #{tpu_custom_call.1} parent=11 // pred_check
          %p193 = pneg %p141
        $region26: #{tpu_custom_call.1} parent=11 // pred_check_branch
          %195 = sbr.rel (%p193) target = $region28
        $region27: #{tpu_custom_call.1} parent=11 // pred_region
          _
        $region28: #{tpu_custom_call.1} parent=11 // pred_fallthru
          _
      $region12: #{tpu_custom_call.1} parent=5 // pred_fallthru
        _
      %p196 = scmp.lt.s32.totalorder %s17, 2
      // Predicated region
      $region29: #{tpu_custom_call.1} parent=5 // pred_check
        %p197 = pneg %p196
      $region30: #{tpu_custom_call.1} parent=5 // pred_check_branch
        %199 = sbr.rel (%p197) target = $region32
      $region31: #{tpu_custom_call.1} parent=5 // pred_region
        // Predicated region
        $region33: #{tpu_custom_call.1} parent=31 // pred_check
          %p200 = pneg %p51
        $region34: #{tpu_custom_call.1} parent=31 // pred_check_branch
          %202 = sbr.rel (%p200) target = $region36
        $region35: #{tpu_custom_call.1} parent=31 // pred_region
          %s203 = sand.u32 %s41, 1
          %s204 = scalar_lea.sflag [#allocation3], %s203
          %s205 = sand.u32 %s41, 1
          %s206 = smul.addr %s205, 80
          %s207 = scalar_lea.vmem [#allocation2], %s206
          %s208 = smul.u32 2, %s25
          %s210 = ssub.s32 1280, 1280
          %211 = vsyncadd %s204, %s210
          %s212 = smul.addr %s24, 10
          %s213 = sadd.s32 %s208, %s212
          %s214 = smul.addr %s213, 128
          %s215 = scalar_lea.hbm %s0, %s214
          %s216 = sshll.u32 %s207, 4
          %s217 = int_to_ptr.vmem [resolvable:$true] %s216
          %222 = dma.hbm_to_vmem [thread:$0]  %s215, 1280, %s217, %s204, 256, 256, 16
        $region36: #{tpu_custom_call.1} parent=31 // pred_fallthru
          _
      $region32: #{tpu_custom_call.1} parent=5 // pred_fallthru
        _
      %p223 = scmp.le.s32.totalorder 1, %s17
      %p224 = scmp.lt.s32.totalorder %s17, 3
      %p225 = pnand %p223, %p224
      %p226 = pneg %p225
      // Predicated region
      $region37: #{tpu_custom_call.1} parent=5 // pred_check
        _
      $region38: #{tpu_custom_call.1} parent=5 // pred_check_branch
        %228 = sbr.rel (%p225) target = $region40
      $region39: #{tpu_custom_call.1} parent=5 // pred_region
        %s229 = ssub.s32 %s17, 1
        %s230 = sand.u32 %s44, 1
        %s231 = scalar_lea.sflag [#allocation3], %s230
        %s232 = sand.u32 %s44, 1
        %s233 = smul.addr %s232, 80
        %s234 = scalar_lea.vmem [#allocation2], %s233
        // Predicated region
        $region41: #{tpu_custom_call.1} parent=39 // pred_check
          %p235 = pneg %p57
        $region42: #{tpu_custom_call.1} parent=39 // pred_check_branch
          %237 = sbr.rel (%p235) target = $region44
        $region43: #{tpu_custom_call.1} parent=39 // pred_region
          %238 = dma.done %s231, 1280
        $region44: #{tpu_custom_call.1} parent=39 // pred_fallthru
          _
        %s239 = sand.u32 %s44, 1
        %s240 = scalar_lea.sflag [#allocation3], %s239
        %s241 = sand.u32 %s44, 1
        %s242 = smul.addr %s241, 80
        %s243 = scalar_lea.vmem [#allocation2], %s242
        %p244 = pneg %p57
        %p245 = pneg %p54
        %p246 = pneg %p78
        %p247 = pneg %p75
        %p248 = pneg %p99
        %p249 = pneg %p96
        %p250 = pneg %p120
        %p251 = pneg %p117
        %p252 = pneg %p141
        %p253 = pneg %p138
        %p254 = pneg %p169
        %p255 = pneg %p166
        %s256 = sand.u32 %s156, 1
        %s257 = scalar_lea.sflag [#allocation4], %s256
        %s258 = sand.u32 %s156, 1
        %s259 = smul.addr %s258, 16
        %s260 = scalar_lea.vmem [#allocation5], %s259
        %s261 = smul.u32 2, %s27
        %s262 = smul.u32 2, %s27
        %v263 = vld [vmem:[%s234] sm:$0xff]
        %v264 = vld [vmem:[%s234 + $0x8] sm:$0xff]
        %v265 = vld [vmem:[%s234 + $0x10] sm:$0xff]
        %v266 = vld [vmem:[%s234 + $0x18] sm:$0xff]
        %v267 = vld [vmem:[%s234 + $0x20] sm:$0xff]
        %v268 = vld [vmem:[%s234 + $0x28] sm:$0xff]
        %v269 = vld [vmem:[%s234 + $0x30] sm:$0xff]
        %v270 = vld [vmem:[%s234 + $0x38] sm:$0xff]
        %v271 = vld [vmem:[%s234 + $0x40] sm:$0xff]
        %v272 = vld [vmem:[%s234 + $0x48] sm:$0xff]
        %v273 = vld [vmem:[%s1] sm:$0xff]
        %v274 = vld [vmem:[%s1 + $0x8] sm:$0xff]
        %v275 = vld [vmem:[%s1 + $0x10] sm:$0xff]
        %v276 = vld [vmem:[%s2] sm:$0xff]
        %v277 = vld [vmem:[%s2 + $0x8] sm:$0xff]
        %v278 = vld [vmem:[%s2 + $0x10] sm:$0xff]
        %280 = vset.pattern.permute.xlu0 0
        %281 = vperm.xlu0 %280, %v276
        %v282 = vpop.permute.xlu0 %281
        %285 = vset.pattern.permute.xlu0 0
        %286 = vperm.xlu0 %285, %v277
        %v287 = vpop.permute.xlu0 %286
        %290 = vset.pattern.permute.xlu0 0
        %291 = vperm.xlu0 %290, %v278
        %v292 = vpop.permute.xlu0 %291
        %vm294 = vcmask 326656
        %v296 = vsel %vm294, %v273, 0
        %v299 = vsel %vm294, %v274, 0
        %v302 = vsel %vm294, %v275, 0
        %304 = vmatprep.subr.mxu0 %v264
        %305 = vmatpush1.msra.mxu0 %v263
        %306 = vmatprep.subr.mxu0 %v266
        %307 = vmatpush1.msra.mxu0 %v265
        %308 = vmatprep.subr.mxu0 %v268
        %309 = vmatpush1.msra.mxu0 %v267
        %310 = vmatprep.subr.mxu0 %v270
        %311 = vmatpush1.msra.mxu0 %v269
        %312 = vmatprep.subr.mxu0 %v272
        %313 = vmatpush1.msra.mxu0 %v271
        %314 = vmatprep.subr.mxu0 0.0
        %315 = vmatpush1.msra.mxu0 0.0
        %316 = vmatprep.subr.mxu0 0.0
        %317 = vmatpush1.msra.mxu0 0.0
        %318 = vmatprep.subr.mxu0 0.0
        %319 = vmatpush1.msra.mxu0 0.0
        %320 = vmatprep.subr.mxu0 0.0
        %321 = vmatpush1.msra.mxu0 0.0
        %322 = vmatprep.subr.mxu0 0.0
        %323 = vmatpush1.msra.mxu0 0.0
        %324 = vmatprep.subr.mxu0 0.0
        %325 = vmatpush1.msra.mxu0 0.0
        %326 = vmatprep.subr.mxu0 0.0
        %327 = vmatpush1.msra.mxu0 0.0
        %328 = vmatprep.subr.mxu0 0.0
        %329 = vmatpush1.msra.mxu0 0.0
        %330 = vmatprep.subr.mxu0 0.0
        %331 = vmatpush1.msra.mxu0 0.0
        %332 = vmatprep.subr.mxu0 0.0
        %333 = vmatpush1.msra.mxu0 0.0
        %334 = vmatprep.subr.mxu0 0.0
        %335 = vmatpush1.msra.mxu0 0.0
        %336 = vmatprep.subr.mxu0 0.0
        %337 = vmatpush1.msra.mxu0 0.0
        %338 = vmatprep.subr.mxu0 0.0
        %339 = vmatpush1.msra.mxu0 0.0
        %340 = vmatprep.subr.mxu0 0.0
        %341 = vmatpush1.msra.mxu0 0.0
        %342 = vmatprep.subr.mxu0 0.0
        %343 = vmatpush1.msra.mxu0 0.0
        %344 = vmatprep.subr.mxu0 0.0
        %345 = vmatpush1.msra.mxu0 0.0
        %346 = vmatprep.subr.mxu0 0.0
        %347 = vmatpush1.msra.mxu0 0.0
        %348 = vmatprep.subr.mxu0 0.0
        %349 = vmatpush1.msra.mxu0 0.0
        %350 = vmatprep.subr.mxu0 0.0
        %351 = vmatpush1.msra.mxu0 0.0
        %352 = vmatprep.subr.mxu0 0.0
        %353 = vmatpush1.msra.mxu0 0.0
        %354 = vmatprep.subr.mxu0 0.0
        %355 = vmatpush1.msra.mxu0 0.0
        %356 = vmatprep.subr.mxu0 0.0
        %357 = vmatpush1.msra.mxu0 0.0
        %358 = vmatprep.subr.mxu0 0.0
        %359 = vmatpush1.msra.mxu0 0.0
        %360 = vmatprep.subr.mxu0 0.0
        %361 = vmatpush1.msra.mxu0 0.0
        %362 = vmatprep.subr.mxu0 0.0
        %363 = vmatpush1.msra.mxu0 0.0
        %364 = vmatprep.subr.mxu0 0.0
        %365 = vmatpush1.msra.mxu0 0.0
        %366 = vmatprep.subr.mxu0 0.0
        %367 = vmatpush1.msra.mxu0 0.0
        %368 = vmatprep.mubr.f32.mxu0 0.0
        %369 = vmatmul.mubr.f32.gmra.mrb[0].mxu0 %v296
        %v370 = vpop.f32.mrb[0].mxu0
        %v371 = vadd.f32 %v282, %v370
        %v372 = vpop.f32.mrb[0].mxu0
        %v373 = vadd.f32 %v282, %v372
        %374 = vmatprep.mubr.f32.mxu0 0.0
        %375 = vmatmul.mubr.f32.gmra.mrb[0].mxu0 %v299
        %v376 = vpop.f32.mrb[0].mxu0
        %v377 = vadd.f32 %v287, %v376
        %v378 = vpop.f32.mrb[0].mxu0
        %v379 = vadd.f32 %v287, %v378
        %380 = vmatprep.mubr.f32.mxu0 0.0
        %381 = vmatmul.mubr.f32.gmra.mrb[0].mxu0 %v302
        %v382 = vpop.f32.mrb[0].mxu0
        %v383 = vadd.f32 %v292, %v382
        %v384 = vpop.f32.mrb[0].mxu0
        %v385 = vadd.f32 %v292, %v384
        %386 = vdwg.mxu0
        %v387 = vmax.f32 %v371, 0.0
        %v388 = vmax.f32 %v373, 0.0
        %v389 = vmax.f32 %v377, 0.0
        %v390 = vmax.f32 %v379, 0.0
        %v391 = vmax.f32 %v383, 0.0
        %v392 = vmax.f32 %v385, 0.0
        %v393 = vmin.f32 %v387, 6.0
        %v394 = vmin.f32 %v388, 6.0
        %v395 = vmin.f32 %v389, 6.0
        %v396 = vmin.f32 %v390, 6.0
        %v397 = vmin.f32 %v391, 6.0
        %v398 = vmin.f32 %v392, 6.0
        %v399 = vld [vmem:[%s3] sm:$0xff]
        %v400 = vld [vmem:[%s4] sm:$0xff]
        %402 = vset.pattern.permute.xlu0 0
        %403 = vperm.xlu0 %402, %v400
        %v404 = vpop.permute.xlu0 %403
        %vm406 = vcmask 195584
        %v408 = vsel %vm406, %v399, 0
        %410 = vmatprep.subr.mxu0 %v394
        %411 = vmatpush1.msra.mxu0 %v393
        %412 = vmatprep.subr.mxu0 %v396
        %413 = vmatpush1.msra.mxu0 %v395
        %414 = vmatprep.subr.mxu0 %v398
        %415 = vmatpush1.msra.mxu0 %v397
        %416 = vmatprep.subr.mxu0 0.0
        %417 = vmatpush1.msra.mxu0 0.0
        %418 = vmatprep.subr.mxu0 0.0
        %419 = vmatpush1.msra.mxu0 0.0
        %420 = vmatprep.subr.mxu0 0.0
        %421 = vmatpush1.msra.mxu0 0.0
        %422 = vmatprep.subr.mxu0 0.0
        %423 = vmatpush1.msra.mxu0 0.0
        %424 = vmatprep.subr.mxu0 0.0
        %425 = vmatpush1.msra.mxu0 0.0
        %426 = vmatprep.subr.mxu0 0.0
        %427 = vmatpush1.msra.mxu0 0.0
        %428 = vmatprep.subr.mxu0 0.0
        %429 = vmatpush1.msra.mxu0 0.0
        %430 = vmatprep.subr.mxu0 0.0
        %431 = vmatpush1.msra.mxu0 0.0
        %432 = vmatprep.subr.mxu0 0.0
        %433 = vmatpush1.msra.mxu0 0.0
        %434 = vmatprep.subr.mxu0 0.0
        %435 = vmatpush1.msra.mxu0 0.0
        %436 = vmatprep.subr.mxu0 0.0
        %437 = vmatpush1.msra.mxu0 0.0
        %438 = vmatprep.subr.mxu0 0.0
        %439 = vmatpush1.msra.mxu0 0.0
        %440 = vmatprep.subr.mxu0 0.0
        %441 = vmatpush1.msra.mxu0 0.0
        %442 = vmatprep.subr.mxu0 0.0
        %443 = vmatpush1.msra.mxu0 0.0
        %444 = vmatprep.subr.mxu0 0.0
        %445 = vmatpush1.msra.mxu0 0.0
        %446 = vmatprep.subr.mxu0 0.0
        %447 = vmatpush1.msra.mxu0 0.0
        %448 = vmatprep.subr.mxu0 0.0
        %449 = vmatpush1.msra.mxu0 0.0
        %450 = vmatprep.subr.mxu0 0.0
        %451 = vmatpush1.msra.mxu0 0.0
        %452 = vmatprep.subr.mxu0 0.0
        %453 = vmatpush1.msra.mxu0 0.0
        %454 = vmatprep.subr.mxu0 0.0
        %455 = vmatpush1.msra.mxu0 0.0
        %456 = vmatprep.subr.mxu0 0.0
        %457 = vmatpush1.msra.mxu0 0.0
        %458 = vmatprep.subr.mxu0 0.0
        %459 = vmatpush1.msra.mxu0 0.0
        %460 = vmatprep.subr.mxu0 0.0
        %461 = vmatpush1.msra.mxu0 0.0
        %462 = vmatprep.subr.mxu0 0.0
        %463 = vmatpush1.msra.mxu0 0.0
        %464 = vmatprep.subr.mxu0 0.0
        %465 = vmatpush1.msra.mxu0 0.0
        %466 = vmatprep.subr.mxu0 0.0
        %467 = vmatpush1.msra.mxu0 0.0
        %468 = vmatprep.subr.mxu0 0.0
        %469 = vmatpush1.msra.mxu0 0.0
        %470 = vmatprep.subr.mxu0 0.0
        %471 = vmatpush1.msra.mxu0 0.0
        %472 = vmatprep.subr.mxu0 0.0
        %473 = vmatpush1.msra.mxu0 0.0
        %474 = vmatprep.mubr.f32.mxu0 0.0
        %475 = vmatmul.mubr.f32.gmra.mrb[0].mxu0 %v408
        %v476 = vpop.f32.mrb[0].mxu0
        %v477 = vadd.f32 %v404, %v476
        %v478 = vpop.f32.mrb[0].mxu0
        %v479 = vadd.f32 %v404, %v478
        %480 = vdwg.mxu0
        %481 = vst [vmem:[%s260] sm:$0xff] %v477
        %482 = vst [vmem:[%s260 + $0x8] sm:$0xff] %v479
        %s483 = sand.u32 %s156, 1
        %s484 = scalar_lea.sflag [#allocation4], %s483
        %s485 = sand.u32 %s156, 1
        %s486 = smul.addr %s485, 16
        %s487 = scalar_lea.vmem [#allocation5], %s486
        // Predicated region
        $region45: #{tpu_custom_call.1} parent=39 // pred_check
          %p488 = pneg %p166
        $region46: #{tpu_custom_call.1} parent=39 // pred_check_branch
          %490 = sbr.rel (%p488) target = $region48
        $region47: #{tpu_custom_call.1} parent=39 // pred_region
          %s491 = smul.u32 2, %s27
          %s493 = ssub.s32 256, 256
          %494 = vsyncadd %s484, %s493
          %s495 = smul.addr %s26, 2
          %s496 = sadd.s32 %s491, %s495
          %s497 = smul.addr %s496, 128
          %s498 = scalar_lea.hbm %s5, %s497
          %s500 = sshll.u32 %s487, 4
          %s501 = int_to_ptr.vmem [resolvable:$true] %s500
          %503 = dma.vmem_to_hbm [thread:$0]  %s501, 256, %s498, %s484
        $region48: #{tpu_custom_call.1} parent=39 // pred_fallthru
          _
      $region40: #{tpu_custom_call.1} parent=5 // pred_fallthru
        _
      %p504 = scmp.le.s32.totalorder 2, %s17
      // Predicated region
      $region49: #{tpu_custom_call.1} parent=5 // pred_check
        %p505 = pneg %p504
      $region50: #{tpu_custom_call.1} parent=5 // pred_check_branch
        %507 = sbr.rel (%p505) target = $region52
      $region51: #{tpu_custom_call.1} parent=5 // pred_region
        %s508 = ssub.s32 %s17, 2
        // Predicated region
        $region53: #{tpu_custom_call.1} parent=51 // pred_check
          %p509 = pneg %p172
        $region54: #{tpu_custom_call.1} parent=51 // pred_check_branch
          %511 = sbr.rel (%p509) target = $region56
        $region55: #{tpu_custom_call.1} parent=51 // pred_region
          %s512 = sand.u32 %s157, 1
          %s513 = scalar_lea.sflag [#allocation4], %s512
          %s514 = sand.u32 %s157, 1
          %s515 = smul.addr %s514, 16
          %s516 = scalar_lea.vmem [#allocation5], %s515
          %517 = dma.done %s513, 256
        $region56: #{tpu_custom_call.1} parent=51 // pred_fallthru
          _
      $region52: #{tpu_custom_call.1} parent=5 // pred_fallthru
        _
    $region6: #{tpu_custom_call.1} parent=1 // loop_footer
      %s21 = sadd.s32 1, %s17
    $region7: #{tpu_custom_call.1} parent=1 // loop_footer_branch
      %16 = sbr.rel target = $region3
    $region8: #{tpu_custom_call.1} parent=1 // loop_exit
      _
    %518 = vsyncpa [#allocation3], 1
    %s519 = scalar_lea.sflag [#allocation3], 1
    %520 = vsyncpa %s519, 1
    %521 = vsyncpa [#allocation4], 1
    %s522 = scalar_lea.sflag [#allocation4], 1
    %523 = vsyncpa %s522, 1

// kernel: tpu_custom_call.1
$region0: #{tpu_custom_call.1}
  #allocation0 [shape = 'u32[]', space=smem, size = 0x4, offset = 0x4, fixed_abs, tag = 'smem constant byte address 0x4 - core index']
  #allocation1 [shape = 'u32[144,128]{1,0:T(1,128)}', space=vmem, size = 0x12000, scoped, tag = 'internal scratch']
  %s0 = inlined_call_operand.hbm [shape: f32[2,40,256], index: 0, kind: input, shape index: {}]
  %s1 = inlined_call_operand.vmem [shape: f32[24,40], index: 1, kind: input, shape index: {}]
  %s2 = inlined_call_operand.vmem [shape: f32[24,1], index: 2, kind: input, shape index: {}]
  %s3 = inlined_call_operand.vmem [shape: f32[8,24], index: 3, kind: input, shape index: {}]
  %s4 = inlined_call_operand.vmem [shape: f32[8,1], index: 4, kind: input, shape index: {}]
  %s5 = inlined_call_operand.hbm [shape: f32[2,8,256], index: 5, kind: output, shape index: {}]
  %s6 = sld [smem:[#allocation0]]
  $region57: #{tpu_custom_call.1} parent=0
    _
  %s8 = ssub.s32 1, %s6
  %s9 = scalar_select 0, %s8, %s6
  $region1: #{tpu_custom_call.1} parent=0
    #allocation2 [shape = 'u8[81920]{0}', space=vmem, size = 0x14000, scoped, tag = 'input window, operand 0']
    #allocation3 [shape = 's32[2]{0}', space=sflag, size = 0x8, scoped, tag = 'scoped memory for tpu_custom_call.1']
    #allocation4 [shape = 's32[2]{0}', space=sflag, size = 0x8, scoped, tag = 'scoped memory for tpu_custom_call.1']
    #allocation5 [shape = 'u8[16384]{0}', space=vmem, size = 0x4000, scoped, tag = 'output window, operand 0']
    %10 = vsyncpa [#allocation3], 0
    %s11 = scalar_lea.sflag [#allocation3], 1
    %12 = vsyncpa %s11, 0
    %13 = vsyncpa [#allocation4], 0
    %s14 = scalar_lea.sflag [#allocation4], 1
    %15 = vsyncpa %s14, 0
    loop: start=0, step=1, limit=4
    $region2: #{tpu_custom_call.1} parent=1 // loop_pre_header
      _
    $region3: #{tpu_custom_call.1} parent=1 // loop_header
      %s17 = sphi 0, %s21
      %p18 = scmp.ge.s32.totalorder %s17, 4
      %s24 = sphi 0, %s36
      %s25 = sphi 0, %s32
      %s26 = sphi 0, %s24
      %s27 = sphi 0, %s25
      %s28 = sphi 0, %s26
      %s29 = sphi 0, %s27
      %s41 = sphi 0, %s43
      %s44 = sphi 0, %s41
      %s45 = sphi 0, %s44
      %s61 = sphi 0, %s45
      %s65 = sphi 0, %s65
      %s67 = sphi 0, %s65
      %s68 = sphi 0, %s67
      %s82 = sphi 0, %s68
      %s86 = sphi 0, %s86
      %s88 = sphi 0, %s86
      %s89 = sphi 0, %s88
      %s103 = sphi 0, %s89
      %s107 = sphi 0, %s107
      %s109 = sphi 0, %s107
      %s110 = sphi 0, %s109
      %s124 = sphi 0, %s110
      %s128 = sphi 0, %s128
      %s130 = sphi 0, %s128
      %s131 = sphi 0, %s130
      %s145 = sphi 0, %s131
      %s153 = sphi 0, %s155
      %s156 = sphi 0, %s153
      %s157 = sphi 0, %s156
      %s173 = sphi 0, %s157
    $region4: #{tpu_custom_call.1} parent=1 // loop_header_branch
      %20 = sbr.rel (%p18) target = $region8
    $region5: #{tpu_custom_call.1} parent=1 // loop_body
      %s22 = ssub.s32 %s17, 1
      %s23 = ssub.s32 %s17, 2
      %s30 = sadd.s32 1, %s25
      %p31 = scmp.ge.s32.totalorder %s30, 1
      %s32 = scalar_select %p31, 0, %s30
      %s33 = sadd.s32 1, %s24
      %s34 = scalar_select %p31, %s33, %s24
      %p35 = scmp.ge.s32.totalorder %s34, 2
      %s36 = scalar_select %p35, 0, %s34
      %s37 = ssub.s32 %s24, %s36
      %s38 = ssub.s32 %s25, %s32
      %s39 = sor.u32 %s37, %s38
      %p40 = scmp.eq.s32.totalorder %s39, 0
      %s42 = sadd.s32 %s41, 1
      %s43 = scalar_select %p40, %s41, %s42
      %p46 = pneg %p40
      %p47 = scmp.eq.s32.totalorder %s17, 1
      %p48 = por %p46, %p47
      %p49 = scmp.ne.s32.totalorder %s41, %s44
      %p50 = scmp.eq.s32.totalorder %s17, 0
      %p51 = por %p49, %p50
      %p52 = scmp.ne.s32.totalorder %s41, %s44
      %p53 = scmp.eq.s32.totalorder %s22, 1
      %p54 = por %p52, %p53
      %p55 = scmp.ne.s32.totalorder %s44, %s45
      %p56 = scmp.eq.s32.totalorder %s22, 0
      %p57 = por %p55, %p56
      %p58 = scmp.ne.s32.totalorder %s44, %s45
      %p59 = scmp.eq.s32.totalorder %s23, 1
      %p60 = por %p58, %p59
      %p62 = scmp.ne.s32.totalorder %s45, %s61
      %p63 = scmp.eq.s32.totalorder %s23, 0
      %p64 = por %p62, %p63
      %s66 = sadd.s32 %s65, 1
      %p69 = scmp.eq.s32.totalorder %s17, 1
      %p70 = scmp.ne.s32.totalorder %s65, %s67
      %p71 = scmp.eq.s32.totalorder %s17, 0
      %p72 = por %p70, %p71
      %p73 = scmp.ne.s32.totalorder %s65, %s67
      %p74 = scmp.eq.s32.totalorder %s22, 1
      %p75 = por %p73, %p74
      %p76 = scmp.ne.s32.totalorder %s67, %s68
      %p77 = scmp.eq.s32.totalorder %s22, 0
      %p78 = por %p76, %p77
      %p79 = scmp.ne.s32.totalorder %s67, %s68
      %p80 = scmp.eq.s32.totalorder %s23, 1
      %p81 = por %p79, %p80
      %p83 = scmp.ne.s32.totalorder %s68, %s82
      %p84 = scmp.eq.s32.totalorder %s23, 0
      %p85 = por %p83, %p84
      %s87 = sadd.s32 %s86, 1
      %p90 = scmp.eq.s32.totalorder %s17, 1
      %p91 = scmp.ne.s32.totalorder %s86, %s88
      %p92 = scmp.eq.s32.totalorder %s17, 0
      %p93 = por %p91, %p92
      %p94 = scmp.ne.s32.totalorder %s86, %s88
      %p95 = scmp.eq.s32.totalorder %s22, 1
      %p96 = por %p94, %p95
      %p97 = scmp.ne.s32.totalorder %s88, %s89
      %p98 = scmp.eq.s32.totalorder %s22, 0
      %p99 = por %p97, %p98
      %p100 = scmp.ne.s32.totalorder %s88, %s89
      %p101 = scmp.eq.s32.totalorder %s23, 1
      %p102 = por %p100, %p101
      %p104 = scmp.ne.s32.totalorder %s89, %s103
      %p105 = scmp.eq.s32.totalorder %s23, 0
      %p106 = por %p104, %p105
      %s108 = sadd.s32 %s107, 1
      %p111 = scmp.eq.s32.totalorder %s17, 1
      %p112 = scmp.ne.s32.totalorder %s107, %s109
      %p113 = scmp.eq.s32.totalorder %s17, 0
      %p114 = por %p112, %p113
      %p115 = scmp.ne.s32.totalorder %s107, %s109
      %p116 = scmp.eq.s32.totalorder %s22, 1
      %p117 = por %p115, %p116
      %p118 = scmp.ne.s32.totalorder %s109, %s110
      %p119 = scmp.eq.s32.totalorder %s22, 0
      %p120 = por %p118, %p119
      %p121 = scmp.ne.s32.totalorder %s109, %s110
      %p122 = scmp.eq.s32.totalorder %s23, 1
      %p123 = por %p121, %p122
      %p125 = scmp.ne.s32.totalorder %s110, %s124
      %p126 = scmp.eq.s32.totalorder %s23, 0
      %p127 = por %p125, %p126
      %s129 = sadd.s32 %s128, 1
      %p132 = scmp.eq.s32.totalorder %s17, 1
      %p133 = scmp.ne.s32.totalorder %s128, %s130
      %p134 = scmp.eq.s32.totalorder %s17, 0
      %p135 = por %p133, %p134
      %p136 = scmp.ne.s32.totalorder %s128, %s130
      %p137 = scmp.eq.s32.totalorder %s22, 1
      %p138 = por %p136, %p137
      %p139 = scmp.ne.s32.totalorder %s130, %s131
      %p140 = scmp.eq.s32.totalorder %s22, 0
      %p141 = por %p139, %p140
      %p142 = scmp.ne.s32.totalorder %s130, %s131
      %p143 = scmp.eq.s32.totalorder %s23, 1
      %p144 = por %p142, %p143
      %p146 = scmp.ne.s32.totalorder %s131, %s145
      %p147 = scmp.eq.s32.totalorder %s23, 0
      %p148 = por %p146, %p147
      %s149 = ssub.s32 %s24, %s36
      %s150 = ssub.s32 %s25, %s32
      %s151 = sor.u32 %s149, %s150
      %p152 = scmp.eq.s32.totalorder %s151, 0
      %s154 = sadd.s32 %s153, 1
      %s155 = scalar_select %p152, %s153, %s154
      %p158 = pneg %p152
      %p159 = scmp.eq.s32.totalorder %s17, 1
      %p160 = por %p158, %p159
      %p161 = scmp.ne.s32.totalorder %s153, %s156
      %p162 = scmp.eq.s32.totalorder %s17, 0
      %p163 = por %p161, %p162
      %p164 = scmp.ne.s32.totalorder %s153, %s156
      %p165 = scmp.eq.s32.totalorder %s22, 1
      %p166 = por %p164, %p165
      %p167 = scmp.ne.s32.totalorder %s156, %s157
      %p168 = scmp.eq.s32.totalorder %s22, 0
      %p169 = por %p167, %p168
      %p170 = scmp.ne.s32.totalorder %s156, %s157
      %p171 = scmp.eq.s32.totalorder %s23, 1
      %p172 = por %p170, %p171
      %p174 = scmp.ne.s32.totalorder %s157, %s173
      %p175 = scmp.eq.s32.totalorder %s23, 0
      %p176 = por %p174, %p175
      %p177 = scmp.le.s32.totalorder 1, %s17
      %p178 = scmp.lt.s32.totalorder %s17, 3
      %p179 = pnand %p177, %p178
      %p180 = pneg %p179
      // Predicated region
      $region9: #{tpu_custom_call.1} parent=5 // pred_check
        _
      $region10: #{tpu_custom_call.1} parent=5 // pred_check_branch
        %182 = sbr.rel (%p179) target = $region12
      $region11: #{tpu_custom_call.1} parent=5 // pred_region
        %s183 = ssub.s32 %s17, 1
        // Predicated region
        $region13: #{tpu_custom_call.1} parent=11 // pred_check
          %p184 = pneg %p78
        $region14: #{tpu_custom_call.1} parent=11 // pred_check_branch
          %186 = sbr.rel (%p184) target = $region16
        $region15: #{tpu_custom_call.1} parent=11 // pred_region
          _
        $region16: #{tpu_custom_call.1} parent=11 // pred_fallthru
          _
        // Predicated region
        $region17: #{tpu_custom_call.1} parent=11 // pred_check
          %p187 = pneg %p99
        $region18: #{tpu_custom_call.1} parent=11 // pred_check_branch
          %189 = sbr.rel (%p187) target = $region20
        $region19: #{tpu_custom_call.1} parent=11 // pred_region
          _
        $region20: #{tpu_custom_call.1} parent=11 // pred_fallthru
          _
        // Predicated region
        $region21: #{tpu_custom_call.1} parent=11 // pred_check
          %p190 = pneg %p120
        $region22: #{tpu_custom_call.1} parent=11 // pred_check_branch
          %192 = sbr.rel (%p190) target = $region24
        $region23: #{tpu_custom_call.1} parent=11 // pred_region
          _
        $region24: #{tpu_custom_call.1} parent=11 // pred_fallthru
          _
        // Predicated region
        $region25: #{tpu_custom_call.1} parent=11 // pred_check
          %p193 = pneg %p141
        $region26: #{tpu_custom_call.1} parent=11 // pred_check_branch
          %195 = sbr.rel (%p193) target = $region28
        $region27: #{tpu_custom_call.1} parent=11 // pred_region
          _
        $region28: #{tpu_custom_call.1} parent=11 // pred_fallthru
          _
      $region12: #{tpu_custom_call.1} parent=5 // pred_fallthru
        _
      %p196 = scmp.lt.s32.totalorder %s17, 2
      // Predicated region
      $region29: #{tpu_custom_call.1} parent=5 // pred_check
        %p197 = pneg %p196
      $region30: #{tpu_custom_call.1} parent=5 // pred_check_branch
        %199 = sbr.rel (%p197) target = $region32
      $region31: #{tpu_custom_call.1} parent=5 // pred_region
        // Predicated region
        $region33: #{tpu_custom_call.1} parent=31 // pred_check
          %p200 = pneg %p51
        $region34: #{tpu_custom_call.1} parent=31 // pred_check_branch
          %202 = sbr.rel (%p200) target = $region36
        $region35: #{tpu_custom_call.1} parent=31 // pred_region
          %s203 = sand.u32 %s41, 1
          %s204 = scalar_lea.sflag [#allocation3], %s203
          %s205 = sand.u32 %s41, 1
          %s206 = smul.addr %s205, 80
          %s207 = scalar_lea.vmem [#allocation2], %s206
          %s208 = smul.u32 2, %s25
          %s210 = ssub.s32 1280, 1280
          %211 = vsyncadd %s204, %s210
          %s212 = smul.addr %s24, 10
          %s213 = sadd.s32 %s208, %s212
          %s214 = smul.addr %s213, 128
          %s215 = scalar_lea.hbm %s0, %s214
          %s216 = sshll.u32 %s207, 4
          %s217 = int_to_ptr.vmem [resolvable:$true] %s216
          %222 = dma.hbm_to_vmem [thread:$0]  %s215, 1280, %s217, %s204, 256, 256, 16
        $region36: #{tpu_custom_call.1} parent=31 // pred_fallthru
          _
      $region32: #{tpu_custom_call.1} parent=5 // pred_fallthru
        _
      %p223 = scmp.le.s32.totalorder 1, %s17
      %p224 = scmp.lt.s32.totalorder %s17, 3
      %p225 = pnand %p223, %p224
      %p226 = pneg %p225
      // Predicated region
      $region37: #{tpu_custom_call.1} parent=5 // pred_check
        _
      $region38: #{tpu_custom_call.1} parent=5 // pred_check_branch
        %228 = sbr.rel (%p225) target = $region40
      $region39: #{tpu_custom_call.1} parent=5 // pred_region
        %s229 = ssub.s32 %s17, 1
        %s230 = sand.u32 %s44, 1
        %s231 = scalar_lea.sflag [#allocation3], %s230
        %s232 = sand.u32 %s44, 1
        %s233 = smul.addr %s232, 80
        %s234 = scalar_lea.vmem [#allocation2], %s233
        // Predicated region
        $region41: #{tpu_custom_call.1} parent=39 // pred_check
          %p235 = pneg %p57
        $region42: #{tpu_custom_call.1} parent=39 // pred_check_branch
          %237 = sbr.rel (%p235) target = $region44
        $region43: #{tpu_custom_call.1} parent=39 // pred_region
          %238 = dma.done %s231, 1280
        $region44: #{tpu_custom_call.1} parent=39 // pred_fallthru
          _
        %s239 = sand.u32 %s44, 1
        %s240 = scalar_lea.sflag [#allocation3], %s239
        %s241 = sand.u32 %s44, 1
        %s242 = smul.addr %s241, 80
        %s243 = scalar_lea.vmem [#allocation2], %s242
        %p244 = pneg %p57
        %p245 = pneg %p54
        %p246 = pneg %p78
        %p247 = pneg %p75
        %p248 = pneg %p99
        %p249 = pneg %p96
        %p250 = pneg %p120
        %p251 = pneg %p117
        %p252 = pneg %p141
        %p253 = pneg %p138
        %p254 = pneg %p169
        %p255 = pneg %p166
        %s256 = sand.u32 %s156, 1
        %s257 = scalar_lea.sflag [#allocation4], %s256
        %s258 = sand.u32 %s156, 1
        %s259 = smul.addr %s258, 16
        %s260 = scalar_lea.vmem [#allocation5], %s259
        %s261 = smul.u32 2, %s27
        %s262 = smul.u32 2, %s27
        %v263 = vld [vmem:[%s234] sm:$0xff]
        %v264 = vld [vmem:[%s234 + $0x8] sm:$0xff]
        %v265 = vld [vmem:[%s234 + $0x10] sm:$0xff]
        %v266 = vld [vmem:[%s234 + $0x18] sm:$0xff]
        %v267 = vld [vmem:[%s234 + $0x20] sm:$0xff]
        %v268 = vld [vmem:[%s234 + $0x28] sm:$0xff]
        %v269 = vld [vmem:[%s234 + $0x30] sm:$0xff]
        %v270 = vld [vmem:[%s234 + $0x38] sm:$0xff]
        %v271 = vld [vmem:[%s234 + $0x40] sm:$0xff]
        %v272 = vld [vmem:[%s234 + $0x48] sm:$0xff]
        %v273 = vld [vmem:[%s1] sm:$0xff]
        %v274 = vld [vmem:[%s1 + $0x8] sm:$0xff]
        %v275 = vld [vmem:[%s1 + $0x10] sm:$0xff]
        %v276 = vld [vmem:[%s2] sm:$0xff]
        %v277 = vld [vmem:[%s2 + $0x8] sm:$0xff]
        %v278 = vld [vmem:[%s2 + $0x10] sm:$0xff]
        %280 = vset.pattern.permute.xlu0 0
        %281 = vperm.xlu0 %280, %v276
        %v282 = vpop.permute.xlu0 %281
        %285 = vset.pattern.permute.xlu0 0
        %286 = vperm.xlu0 %285, %v277
        %v287 = vpop.permute.xlu0 %286
        %290 = vset.pattern.permute.xlu0 0
        %291 = vperm.xlu0 %290, %v278
        %v292 = vpop.permute.xlu0 %291
        %vm294 = vcmask 326656
        %v296 = vsel %vm294, %v273, 0
        %v299 = vsel %vm294, %v274, 0
        %v302 = vsel %vm294, %v275, 0
        %304 = vmatprep.subr.mxu0 %v264
        %305 = vmatpush1.msra.mxu0 %v263
        %306 = vmatprep.subr.mxu0 %v266
        %307 = vmatpush1.msra.mxu0 %v265
        %308 = vmatprep.subr.mxu0 %v268
        %309 = vmatpush1.msra.mxu0 %v267
        %310 = vmatprep.subr.mxu0 %v270
        %311 = vmatpush1.msra.mxu0 %v269
        %312 = vmatprep.subr.mxu0 %v272
        %313 = vmatpush1.msra.mxu0 %v271
        %314 = vmatprep.subr.mxu0 0.0
        %315 = vmatpush1.msra.mxu0 0.0
        %316 = vmatprep.subr.mxu0 0.0
        %317 = vmatpush1.msra.mxu0 0.0
        %318 = vmatprep.subr.mxu0 0.0
        %319 = vmatpush1.msra.mxu0 0.0
        %320 = vmatprep.subr.mxu0 0.0
        %321 = vmatpush1.msra.mxu0 0.0
        %322 = vmatprep.subr.mxu0 0.0
        %323 = vmatpush1.msra.mxu0 0.0
        %324 = vmatprep.subr.mxu0 0.0
        %325 = vmatpush1.msra.mxu0 0.0
        %326 = vmatprep.subr.mxu0 0.0
        %327 = vmatpush1.msra.mxu0 0.0
        %328 = vmatprep.subr.mxu0 0.0
        %329 = vmatpush1.msra.mxu0 0.0
        %330 = vmatprep.subr.mxu0 0.0
        %331 = vmatpush1.msra.mxu0 0.0
        %332 = vmatprep.subr.mxu0 0.0
        %333 = vmatpush1.msra.mxu0 0.0
        %334 = vmatprep.subr.mxu0 0.0
        %335 = vmatpush1.msra.mxu0 0.0
        %336 = vmatprep.subr.mxu0 0.0
        %337 = vmatpush1.msra.mxu0 0.0
        %338 = vmatprep.subr.mxu0 0.0
        %339 = vmatpush1.msra.mxu0 0.0
        %340 = vmatprep.subr.mxu0 0.0
        %341 = vmatpush1.msra.mxu0 0.0
        %342 = vmatprep.subr.mxu0 0.0
        %343 = vmatpush1.msra.mxu0 0.0
        %344 = vmatprep.subr.mxu0 0.0
        %345 = vmatpush1.msra.mxu0 0.0
        %346 = vmatprep.subr.mxu0 0.0
        %347 = vmatpush1.msra.mxu0 0.0
        %348 = vmatprep.subr.mxu0 0.0
        %349 = vmatpush1.msra.mxu0 0.0
        %350 = vmatprep.subr.mxu0 0.0
        %351 = vmatpush1.msra.mxu0 0.0
        %352 = vmatprep.subr.mxu0 0.0
        %353 = vmatpush1.msra.mxu0 0.0
        %354 = vmatprep.subr.mxu0 0.0
        %355 = vmatpush1.msra.mxu0 0.0
        %356 = vmatprep.subr.mxu0 0.0
        %357 = vmatpush1.msra.mxu0 0.0
        %358 = vmatprep.subr.mxu0 0.0
        %359 = vmatpush1.msra.mxu0 0.0
        %360 = vmatprep.subr.mxu0 0.0
        %361 = vmatpush1.msra.mxu0 0.0
        %362 = vmatprep.subr.mxu0 0.0
        %363 = vmatpush1.msra.mxu0 0.0
        %364 = vmatprep.subr.mxu0 0.0
        %365 = vmatpush1.msra.mxu0 0.0
        %366 = vmatprep.subr.mxu0 0.0
        %367 = vmatpush1.msra.mxu0 0.0
        %368 = vmatprep.mubr.f32.mxu0 0.0
        %369 = vmatmul.mubr.f32.gmra.mrb[0].mxu0 %v296
        %v370 = vpop.f32.mrb[0].mxu0
        %v371 = vadd.f32 %v282, %v370
        %v372 = vpop.f32.mrb[0].mxu0
        %v373 = vadd.f32 %v282, %v372
        %374 = vmatprep.mubr.f32.mxu0 0.0
        %375 = vmatmul.mubr.f32.gmra.mrb[0].mxu0 %v299
        %v376 = vpop.f32.mrb[0].mxu0
        %v377 = vadd.f32 %v287, %v376
        %v378 = vpop.f32.mrb[0].mxu0
        %v379 = vadd.f32 %v287, %v378
        %380 = vmatprep.mubr.f32.mxu0 0.0
        %381 = vmatmul.mubr.f32.gmra.mrb[0].mxu0 %v302
        %v382 = vpop.f32.mrb[0].mxu0
        %v383 = vadd.f32 %v292, %v382
        %v384 = vpop.f32.mrb[0].mxu0
        %v385 = vadd.f32 %v292, %v384
        %386 = vdwg.mxu0
        %v387 = vmax.f32 %v371, 0.0
        %v388 = vmax.f32 %v373, 0.0
        %v389 = vmax.f32 %v377, 0.0
        %v390 = vmax.f32 %v379, 0.0
        %v391 = vmax.f32 %v383, 0.0
        %v392 = vmax.f32 %v385, 0.0
        %v393 = vmin.f32 %v387, 6.0
        %v394 = vmin.f32 %v388, 6.0
        %v395 = vmin.f32 %v389, 6.0
        %v396 = vmin.f32 %v390, 6.0
        %v397 = vmin.f32 %v391, 6.0
        %v398 = vmin.f32 %v392, 6.0
        %v399 = vld [vmem:[%s3] sm:$0xff]
        %v400 = vld [vmem:[%s4] sm:$0xff]
        %402 = vset.pattern.permute.xlu0 0
        %403 = vperm.xlu0 %402, %v400
        %v404 = vpop.permute.xlu0 %403
        %vm406 = vcmask 195584
        %v408 = vsel %vm406, %v399, 0
        %410 = vmatprep.subr.mxu0 %v394
        %411 = vmatpush1.msra.mxu0 %v393
        %412 = vmatprep.subr.mxu0 %v396
        %413 = vmatpush1.msra.mxu0 %v395
        %414 = vmatprep.subr.mxu0 %v398
        %415 = vmatpush1.msra.mxu0 %v397
        %416 = vmatprep.subr.mxu0 0.0
        %417 = vmatpush1.msra.mxu0 0.0
        %418 = vmatprep.subr.mxu0 0.0
        %419 = vmatpush1.msra.mxu0 0.0
        %420 = vmatprep.subr.mxu0 0.0
        %421 = vmatpush1.msra.mxu0 0.0
        %422 = vmatprep.subr.mxu0 0.0
        %423 = vmatpush1.msra.mxu0 0.0
        %424 = vmatprep.subr.mxu0 0.0
        %425 = vmatpush1.msra.mxu0 0.0
        %426 = vmatprep.subr.mxu0 0.0
        %427 = vmatpush1.msra.mxu0 0.0
        %428 = vmatprep.subr.mxu0 0.0
        %429 = vmatpush1.msra.mxu0 0.0
        %430 = vmatprep.subr.mxu0 0.0
        %431 = vmatpush1.msra.mxu0 0.0
        %432 = vmatprep.subr.mxu0 0.0
        %433 = vmatpush1.msra.mxu0 0.0
        %434 = vmatprep.subr.mxu0 0.0
        %435 = vmatpush1.msra.mxu0 0.0
        %436 = vmatprep.subr.mxu0 0.0
        %437 = vmatpush1.msra.mxu0 0.0
        %438 = vmatprep.subr.mxu0 0.0
        %439 = vmatpush1.msra.mxu0 0.0
        %440 = vmatprep.subr.mxu0 0.0
        %441 = vmatpush1.msra.mxu0 0.0
        %442 = vmatprep.subr.mxu0 0.0
        %443 = vmatpush1.msra.mxu0 0.0
        %444 = vmatprep.subr.mxu0 0.0
        %445 = vmatpush1.msra.mxu0 0.0
        %446 = vmatprep.subr.mxu0 0.0
        %447 = vmatpush1.msra.mxu0 0.0
        %448 = vmatprep.subr.mxu0 0.0
        %449 = vmatpush1.msra.mxu0 0.0
        %450 = vmatprep.subr.mxu0 0.0
        %451 = vmatpush1.msra.mxu0 0.0
        %452 = vmatprep.subr.mxu0 0.0
        %453 = vmatpush1.msra.mxu0 0.0
        %454 = vmatprep.subr.mxu0 0.0
        %455 = vmatpush1.msra.mxu0 0.0
        %456 = vmatprep.subr.mxu0 0.0
        %457 = vmatpush1.msra.mxu0 0.0
        %458 = vmatprep.subr.mxu0 0.0
        %459 = vmatpush1.msra.mxu0 0.0
        %460 = vmatprep.subr.mxu0 0.0
        %461 = vmatpush1.msra.mxu0 0.0
        %462 = vmatprep.subr.mxu0 0.0
        %463 = vmatpush1.msra.mxu0 0.0
        %464 = vmatprep.subr.mxu0 0.0
        %465 = vmatpush1.msra.mxu0 0.0
        %466 = vmatprep.subr.mxu0 0.0
        %467 = vmatpush1.msra.mxu0 0.0
        %468 = vmatprep.subr.mxu0 0.0
        %469 = vmatpush1.msra.mxu0 0.0
        %470 = vmatprep.subr.mxu0 0.0
        %471 = vmatpush1.msra.mxu0 0.0
        %472 = vmatprep.subr.mxu0 0.0
        %473 = vmatpush1.msra.mxu0 0.0
        %474 = vmatprep.mubr.f32.mxu0 0.0
        %475 = vmatmul.mubr.f32.gmra.mrb[0].mxu0 %v408
        %v476 = vpop.f32.mrb[0].mxu0
        %v477 = vadd.f32 %v404, %v476
        %v478 = vpop.f32.mrb[0].mxu0
        %v479 = vadd.f32 %v404, %v478
        %480 = vdwg.mxu0
        %481 = vst [vmem:[%s260] sm:$0xff] %v477
        %482 = vst [vmem:[%s260 + $0x8] sm:$0xff] %v479
        %s483 = sand.u32 %s156, 1
        %s484 = scalar_lea.sflag [#allocation4], %s483
        %s485 = sand.u32 %s156, 1
        %s486 = smul.addr %s485, 16
        %s487 = scalar_lea.vmem [#allocation5], %s486
        // Predicated region
        $region45: #{tpu_custom_call.1} parent=39 // pred_check
          %p488 = pneg %p166
        $region46: #{tpu_custom_call.1} parent=39 // pred_check_branch
          %490 = sbr.rel (%p488) target = $region48
        $region47: #{tpu_custom_call.1} parent=39 // pred_region
          %s491 = smul.u32 2, %s27
          %s493 = ssub.s32 256, 256
          %494 = vsyncadd %s484, %s493
          %s495 = smul.addr %s26, 2
          %s496 = sadd.s32 %s491, %s495
          %s497 = smul.addr %s496, 128
          %s498 = scalar_lea.hbm %s5, %s497
          %s500 = sshll.u32 %s487, 4
          %s501 = int_to_ptr.vmem [resolvable:$true] %s500
          %503 = dma.vmem_to_hbm [thread:$0]  %s501, 256, %s498, %s484
        $region48: #{tpu_custom_call.1} parent=39 // pred_fallthru
          _
      $region40: #{tpu_custom_call.1} parent=5 // pred_fallthru
        _
      %p504 = scmp.le.s32.totalorder 2, %s17
      // Predicated region
      $region49: #{tpu_custom_call.1} parent=5 // pred_check
        %p505 = pneg %p504
      $region50: #{tpu_custom_call.1} parent=5 // pred_check_branch
        %507 = sbr.rel (%p505) target = $region52
      $region51: #{tpu_custom_call.1} parent=5 // pred_region
        %s508 = ssub.s32 %s17, 2
        // Predicated region
        $region53: #{tpu_custom_call.1} parent=51 // pred_check
          %p509 = pneg %p172
        $region54: #{tpu_custom_call.1} parent=51 // pred_check_branch
          %511 = sbr.rel (%p509) target = $region56
        $region55: #{tpu_custom_call.1} parent=51 // pred_region
          %s512 = sand.u32 %s157, 1
          %s513 = scalar_lea.sflag [#allocation4], %s512
          %s514 = sand.u32 %s157, 1
          %s515 = smul.addr %s514, 16
          %s516 = scalar_lea.vmem [#allocation5], %s515
          %517 = dma.done %s513, 256
        $region56: #{tpu_custom_call.1} parent=51 // pred_fallthru
          _
      $region52: #{tpu_custom_call.1} parent=5 // pred_fallthru
        _
    $region6: #{tpu_custom_call.1} parent=1 // loop_footer
      %s21 = sadd.s32 1, %s17
    $region7: #{tpu_custom_call.1} parent=1 // loop_footer_branch
      %16 = sbr.rel target = $region3
    $region8: #{tpu_custom_call.1} parent=1 // loop_exit
      _
    %518 = vsyncpa [#allocation3], 1
    %s519 = scalar_lea.sflag [#allocation3], 1
    %520 = vsyncpa %s519, 1
    %521 = vsyncpa [#allocation4], 1
    %s522 = scalar_lea.sflag [#allocation4], 1
    %523 = vsyncpa %s522, 1

</llo_original>
